<compile_context>
chip_gen: v6e
topology: v6e:2x2x1
jax: 0.10.0
libtpu: 0.0.40
codegen_flags: <defaults>
</compile_context>

<pallas_src>
import jax
import jax.numpy as jnp
from jax.experimental import pallas as pl
from jax.experimental.pallas import tpu as pltpu


def _round_up(x, m):
    return (x + m - 1) // m * m


def classifier_kernel(x_ref, w1_ref, b1_ref, w2_ref, b2_ref, w3_ref, b3_ref,
                      out_ref):
    """One batch tile of the fused forward pass.

    x_ref : (TB, D)  bf16     w1_ref: (D, H)  bf16    b1_ref: (1, H)  f32
    w2_ref: (H, D)   bf16     b2_ref: (1, D)  f32
    w3_ref: (D, Cp)  bf16     b3_ref: (1, Cp) f32
    out_ref: (TB, Cp) f32
    """
    # fc1[0]: Linear(D, 256) -> ReLU   (bf16 MXU inputs, f32 accumulation)
    h = jnp.dot(x_ref[...], w1_ref[...], preferred_element_type=jnp.float32)
    h = jnp.maximum(h + b1_ref[...], 0.0)

    # fc1[2]: Linear(256, D)
    y = jnp.dot(h.astype(jnp.bfloat16), w2_ref[...],
                preferred_element_type=jnp.float32)
    # bias + residual; re-read x from VMEM here (keeps vreg pressure low).
    y = y + b2_ref[...] + x_ref[...].astype(jnp.float32)

    # fc2: Linear(D, C)   (class dim pre-padded to Cp -> lane-dense store)
    out = jnp.dot(y.astype(jnp.bfloat16), w3_ref[...],
                  preferred_element_type=jnp.float32)
    out_ref[...] = out + b3_ref[...]


def _pick_batch_tile(B, block_b):
    """Batch tile: multiple of 16 (bf16 sublane packing), >=2 grid steps when
    the batch allows it (v7x megacore), single full-array tile for tiny B."""
    if B <= 8:
        return _round_up(max(B, 1), 8)          # block == full (padded) array
    full = _round_up(B, 16)
    tb = max(16, min(_round_up(block_b, 16), full))
    if tb >= full and full >= 32:
        tb = _round_up(full // 2, 16)           # split across both v7x cores
    return tb


def _vmem_limit_bytes():
    """Generation-dependent VMEM budget: ~48 MiB on v7x, ~96 MiB on v5e/v6e."""
    try:
        cap = pltpu.get_tpu_info().vmem_capacity_bytes
        return min(int(cap * 3 // 4), 100 * 1024 * 1024)
    except Exception:
        return 48 * 1024 * 1024                 # safe on every generation


def classifier_forward(x, params, num_classes, *, block_b=1024):
    """x: (B, D) float; params from init_params (w3/b3 class-dim pre-padded)."""
    w1, b1, w2, b2, w3, b3 = params
    B, D = x.shape
    H = w1.shape[1]
    Cp = w3.shape[1]                            # already lane-padded at init

    TB = _pick_batch_tile(B, block_b)
    Bp = _round_up(B, TB)
    grid = (Bp // TB,)

    # Activation I/O in bf16; pad only the batch dim (feature dim stays D).
    xb = x.astype(jnp.bfloat16)
    if Bp != B:
        xb = jnp.pad(xb, ((0, Bp - B), (0, 0)))

    flops = 2 * Bp * (D * H + H * D + D * Cp)
    bytes_accessed = (
        Bp * D * 2 + Bp * Cp * 4                          # x in, out
        + (w1.size + w2.size + w3.size) * 2               # bf16 weights
        + (b1.size + b2.size + b3.size) * 4)              # f32 biases
    cost = pl.CostEstimate(flops=flops, transcendentals=0,
                           bytes_accessed=bytes_accessed)

    def _call(single_buffer_weights):
        def wspec(shape):
            if single_buffer_weights:
                return pl.BlockSpec(shape, lambda i: (0, 0),
                                    pipeline_mode=pl.Buffered(1))
            return pl.BlockSpec(shape, lambda i: (0, 0))

        grid_spec = pl.GridSpec(
            grid=grid,
            in_specs=[
                pl.BlockSpec((TB, D), lambda i: (i, 0)),   # x tile (pipelined)
                wspec((D, H)),  wspec((1, H)),             # fc1[0]
                wspec((H, D)),  wspec((1, D)),             # fc1[2]
                wspec((D, Cp)), wspec((1, Cp)),            # fc2
            ],
            out_specs=pl.BlockSpec((TB, Cp), lambda i: (i, 0)),
        )
        return pl.pallas_call(
            classifier_kernel,
            out_shape=jax.ShapeDtypeStruct((Bp, Cp), jnp.float32),
            grid_spec=grid_spec,
            compiler_params=pltpu.CompilerParams(
                dimension_semantics=("parallel",),
                vmem_limit_bytes=_vmem_limit_bytes(),
            ),
            cost_estimate=cost,
        )(xb, w1, b1, w2, b2, w3, b3)

    try:
        out = _call(True)       # single-buffered, VMEM-resident weights
    except Exception:
        out = _call(False)      # fallback: default (double) buffering
    return out[:B, :num_classes]


def init_params(key, input_dim, num_classes, hidden=256):
    """Parameters matching the PyTorch module, in kernel layout.

    nn.Linear stores weight as (out, in); here weights are (in, out) so the
    kernel computes x @ W.  Weights are bf16 (MXU-native), biases f32.  The
    fc2 class dim is padded to lane width ONCE here (not per forward call).
    """
    k1, k2, k3, k4, k5, k6 = jax.random.split(key, 6)

    def lin(kw, kb, fan_in, fan_out):
        bound = 1.0 / jnp.sqrt(fan_in)
        w = jax.random.uniform(kw, (fan_in, fan_out), jnp.float32, -bound, bound)
        b = jax.random.uniform(kb, (1, fan_out), jnp.float32, -bound, bound)
        return w.astype(jnp.bfloat16), b

    w1, b1 = lin(k1, k2, input_dim, hidden)        # fc1[0]: Linear(D, 256)
    w2, b2 = lin(k3, k4, hidden, input_dim)        # fc1[2]: Linear(256, D)
    w3, b3 = lin(k5, k6, input_dim, num_classes)   # fc2:   Linear(D, C)

    Cp = _round_up(num_classes, 128)               # lane-dense output stores
    w3 = jnp.pad(w3, ((0, 0), (0, Cp - num_classes)))
    b3 = jnp.pad(b3, ((0, 0), (0, Cp - num_classes)))
    return (w1, b1, w2, b2, w3, b3)


def reference_forward(x, params, num_classes):
    """Plain-JAX reference using the same bf16-input / f32-accum math."""
    w1, b1, w2, b2, w3, b3 = params
    xb = x.astype(jnp.bfloat16)
    h = jnp.dot(xb, w1, preferred_element_type=jnp.float32) + b1
    h = jnp.maximum(h, 0.0)
    y = (jnp.dot(h.astype(jnp.bfloat16), w2, preferred_element_type=jnp.float32)
         + b2 + xb.astype(jnp.float32))
    out = jnp.dot(y.astype(jnp.bfloat16), w3, preferred_element_type=jnp.float32) + b3
    return out[:, :num_classes]


if __name__ == "__main__":
    key = jax.random.PRNGKey(0)
    kx, kp = jax.random.split(key)

    B, D, C = 8, 32, 10          # batch=8, input_dim=32, num_classes=10
    x = jax.random.normal(kx, (B, D), dtype=jnp.float32)
    params = init_params(kp, D, C)

    out = classifier_forward(x, params, C)
    out = jax.block_until_ready(out)

    ref = reference_forward(x, params, C)
    assert out.shape == (B, C)
    assert jnp.allclose(out, ref, atol=1e-3, rtol=1e-3), "mismatch vs reference"

    print("KERNEL_OK")
</pallas_src>

<mosaic_0001>
module attributes {stable_mosaic.version = 11 : i64} {
  func.func @classifier_kernel(%arg0: i32, %arg1: memref<8x32xbf16, #tpu.memory_space<vmem>>, %arg2: memref<32x256xbf16, #tpu.memory_space<vmem>>, %arg3: memref<1x256xf32, #tpu.memory_space<vmem>>, %arg4: memref<256x32xbf16, #tpu.memory_space<vmem>>, %arg5: memref<1x32xf32, #tpu.memory_space<vmem>>, %arg6: memref<32x128xbf16, #tpu.memory_space<vmem>>, %arg7: memref<1x128xf32, #tpu.memory_space<vmem>>, %arg8: memref<8x128xf32, #tpu.memory_space<vmem>>) attributes {dimension_semantics = [#tpu.dimension_semantics<parallel>], iteration_bounds = array<i64: 1>, scalar_prefetch = 0 : i64, scratch_operands = 0 : i64, tpu.core_type = #tpu.core_type<tc>, window_params = [{transform_indices = @transform_0, window_bounds = array<i64: 8, 32>}, {pipeline_mode = #tpu.pipeline_mode<synchronous>, transform_indices = @transform_1, window_bounds = array<i64: 32, 256>}, {pipeline_mode = #tpu.pipeline_mode<synchronous>, transform_indices = @transform_2, window_bounds = array<i64: 1, 256>}, {pipeline_mode = #tpu.pipeline_mode<synchronous>, transform_indices = @transform_3, window_bounds = array<i64: 256, 32>}, {pipeline_mode = #tpu.pipeline_mode<synchronous>, transform_indices = @transform_4, window_bounds = array<i64: 1, 32>}, {pipeline_mode = #tpu.pipeline_mode<synchronous>, transform_indices = @transform_5, window_bounds = array<i64: 32, 128>}, {pipeline_mode = #tpu.pipeline_mode<synchronous>, transform_indices = @transform_6, window_bounds = array<i64: 1, 128>}, {transform_indices = @transform_7, window_bounds = array<i64: 8, 128>}]} {
    %c0 = arith.constant 0 : index
    %c0_0 = arith.constant 0 : index
    %0 = vector.load %arg1[%c0, %c0_0] : memref<8x32xbf16, #tpu.memory_space<vmem>>, vector<8x32xbf16>
    %c0_1 = arith.constant 0 : index
    %c0_2 = arith.constant 0 : index
    %1 = vector.load %arg2[%c0_1, %c0_2] : memref<32x256xbf16, #tpu.memory_space<vmem>>, vector<32x256xbf16>
    %cst = arith.constant dense<0.000000e+00> : vector<8x256xf32>
    %2 = tpu.matmul %0, %1, %cst {dimension_numbers = #tpu.dot_dimension_numbers<[1], [0], [0], [1], [0, 0, 1, 1], [], []>} : vector<8x32xbf16>, vector<32x256xbf16>, vector<8x256xf32> -> vector<8x256xf32>
    %c0_3 = arith.constant 0 : index
    %c0_4 = arith.constant 0 : index
    %3 = vector.load %arg3[%c0_3, %c0_4] : memref<1x256xf32, #tpu.memory_space<vmem>>, vector<1x256xf32>
    %4 = vector.broadcast %3 : vector<1x256xf32> to vector<8x256xf32>
    %5 = arith.addf %2, %4 : vector<8x256xf32>
    %cst_5 = arith.constant 0.000000e+00 : f32
    %6 = vector.broadcast %cst_5 : f32 to vector<8x256xf32>
    %7 = arith.maximumf %5, %6 : vector<8x256xf32>
    %8 = arith.truncf %7 : vector<8x256xf32> to vector<8x256xbf16>
    %c0_6 = arith.constant 0 : index
    %c0_7 = arith.constant 0 : index
    %9 = vector.load %arg4[%c0_6, %c0_7] : memref<256x32xbf16, #tpu.memory_space<vmem>>, vector<256x32xbf16>
    %cst_8 = arith.constant dense<0.000000e+00> : vector<8x32xf32>
    %10 = tpu.matmul %8, %9, %cst_8 {dimension_numbers = #tpu.dot_dimension_numbers<[1], [0], [0], [1], [0, 0, 1, 1], [], []>} : vector<8x256xbf16>, vector<256x32xbf16>, vector<8x32xf32> -> vector<8x32xf32>
    %c0_9 = arith.constant 0 : index
    %c0_10 = arith.constant 0 : index
    %11 = vector.load %arg5[%c0_9, %c0_10] : memref<1x32xf32, #tpu.memory_space<vmem>>, vector<1x32xf32>
    %12 = vector.broadcast %11 : vector<1x32xf32> to vector<8x32xf32>
    %13 = arith.addf %10, %12 : vector<8x32xf32>
    %c0_11 = arith.constant 0 : index
    %c0_12 = arith.constant 0 : index
    %14 = vector.load %arg1[%c0_11, %c0_12] : memref<8x32xbf16, #tpu.memory_space<vmem>>, vector<8x32xbf16>
    %15 = arith.extf %14 : vector<8x32xbf16> to vector<8x32xf32>
    %16 = arith.addf %13, %15 : vector<8x32xf32>
    %17 = arith.truncf %16 : vector<8x32xf32> to vector<8x32xbf16>
    %c0_13 = arith.constant 0 : index
    %c0_14 = arith.constant 0 : index
    %18 = vector.load %arg6[%c0_13, %c0_14] : memref<32x128xbf16, #tpu.memory_space<vmem>>, vector<32x128xbf16>
    %cst_15 = arith.constant dense<0.000000e+00> : vector<8x128xf32>
    %19 = tpu.matmul %17, %18, %cst_15 {dimension_numbers = #tpu.dot_dimension_numbers<[1], [0], [0], [1], [0, 0, 1, 1], [], []>} : vector<8x32xbf16>, vector<32x128xbf16>, vector<8x128xf32> -> vector<8x128xf32>
    %c0_16 = arith.constant 0 : index
    %c0_17 = arith.constant 0 : index
    %20 = vector.load %arg7[%c0_16, %c0_17] : memref<1x128xf32, #tpu.memory_space<vmem>>, vector<1x128xf32>
    %21 = vector.broadcast %20 : vector<1x128xf32> to vector<8x128xf32>
    %22 = arith.addf %19, %21 : vector<8x128xf32>
    %c0_18 = arith.constant 0 : index
    %c0_19 = arith.constant 0 : index
    %23 = vector.load %arg8[%c0_18, %c0_19] : memref<8x128xf32, #tpu.memory_space<vmem>>, vector<8x128xf32>
    tpu.vector_store %arg8[%c0_18, %c0_19], %22 {strides = array<i32>} : memref<8x128xf32, #tpu.memory_space<vmem>>, vector<8x128xf32>,
    return
  }
  func.func @transform_0(%arg0: i32) -> (i32, i32) {
    %c0_i32 = arith.constant 0 : i32
    %c0_i32_0 = arith.constant 0 : i32
    return %arg0, %c0_i32 : i32, i32
  }
  func.func @transform_1(%arg0: i32) -> (i32, i32) {
    %c0_i32 = arith.constant 0 : i32
    %c0_i32_0 = arith.constant 0 : i32
    %c0_i32_1 = arith.constant 0 : i32
    return %c0_i32, %c0_i32_0 : i32, i32
  }
  func.func @transform_2(%arg0: i32) -> (i32, i32) {
    %c0_i32 = arith.constant 0 : i32
    %c0_i32_0 = arith.constant 0 : i32
    %c0_i32_1 = arith.constant 0 : i32
    return %c0_i32, %c0_i32_0 : i32, i32
  }
  func.func @transform_3(%arg0: i32) -> (i32, i32) {
    %c0_i32 = arith.constant 0 : i32
    %c0_i32_0 = arith.constant 0 : i32
    %c0_i32_1 = arith.constant 0 : i32
    return %c0_i32, %c0_i32_0 : i32, i32
  }
  func.func @transform_4(%arg0: i32) -> (i32, i32) {
    %c0_i32 = arith.constant 0 : i32
    %c0_i32_0 = arith.constant 0 : i32
    %c0_i32_1 = arith.constant 0 : i32
    return %c0_i32, %c0_i32_0 : i32, i32
  }
  func.func @transform_5(%arg0: i32) -> (i32, i32) {
    %c0_i32 = arith.constant 0 : i32
    %c0_i32_0 = arith.constant 0 : i32
    %c0_i32_1 = arith.constant 0 : i32
    return %c0_i32, %c0_i32_0 : i32, i32
  }
  func.func @transform_6(%arg0: i32) -> (i32, i32) {
    %c0_i32 = arith.constant 0 : i32
    %c0_i32_0 = arith.constant 0 : i32
    %c0_i32_1 = arith.constant 0 : i32
    return %c0_i32, %c0_i32_0 : i32, i32
  }
  func.func @transform_7(%arg0: i32) -> (i32, i32) {
    %c0_i32 = arith.constant 0 : i32
    %c0_i32_0 = arith.constant 0 : i32
    return %arg0, %c0_i32 : i32, i32
  }
}

module attributes {stable_mosaic.version = 11 : i64} {
  func.func @classifier_kernel(%arg0: i32, %arg1: memref<8x32xbf16, #tpu.memory_space<vmem>>, %arg2: memref<32x256xbf16, #tpu.memory_space<vmem>>, %arg3: memref<1x256xf32, #tpu.memory_space<vmem>>, %arg4: memref<256x32xbf16, #tpu.memory_space<vmem>>, %arg5: memref<1x32xf32, #tpu.memory_space<vmem>>, %arg6: memref<32x128xbf16, #tpu.memory_space<vmem>>, %arg7: memref<1x128xf32, #tpu.memory_space<vmem>>, %arg8: memref<8x128xf32, #tpu.memory_space<vmem>>) attributes {dimension_semantics = [#tpu.dimension_semantics<parallel>], iteration_bounds = array<i64: 1>, scalar_prefetch = 0 : i64, scratch_operands = 0 : i64, tpu.core_type = #tpu.core_type<tc>, window_params = [{transform_indices = @transform_0, window_bounds = array<i64: 8, 32>}, {pipeline_mode = #tpu.pipeline_mode<synchronous>, transform_indices = @transform_1, window_bounds = array<i64: 32, 256>}, {pipeline_mode = #tpu.pipeline_mode<synchronous>, transform_indices = @transform_2, window_bounds = array<i64: 1, 256>}, {pipeline_mode = #tpu.pipeline_mode<synchronous>, transform_indices = @transform_3, window_bounds = array<i64: 256, 32>}, {pipeline_mode = #tpu.pipeline_mode<synchronous>, transform_indices = @transform_4, window_bounds = array<i64: 1, 32>}, {pipeline_mode = #tpu.pipeline_mode<synchronous>, transform_indices = @transform_5, window_bounds = array<i64: 32, 128>}, {pipeline_mode = #tpu.pipeline_mode<synchronous>, transform_indices = @transform_6, window_bounds = array<i64: 1, 128>}, {transform_indices = @transform_7, window_bounds = array<i64: 8, 128>}]} {
    %c0 = arith.constant 0 : index
    %c0_0 = arith.constant 0 : index
    %0 = vector.load %arg1[%c0, %c0_0] : memref<8x32xbf16, #tpu.memory_space<vmem>>, vector<8x32xbf16>
    %c0_1 = arith.constant 0 : index
    %c0_2 = arith.constant 0 : index
    %1 = vector.load %arg2[%c0_1, %c0_2] : memref<32x256xbf16, #tpu.memory_space<vmem>>, vector<32x256xbf16>
    %cst = arith.constant dense<0.000000e+00> : vector<8x256xf32>
    %2 = tpu.matmul %0, %1, %cst {dimension_numbers = #tpu.dot_dimension_numbers<[1], [0], [0], [1], [0, 0, 1, 1], [], []>} : vector<8x32xbf16>, vector<32x256xbf16>, vector<8x256xf32> -> vector<8x256xf32>
    %c0_3 = arith.constant 0 : index
    %c0_4 = arith.constant 0 : index
    %3 = vector.load %arg3[%c0_3, %c0_4] : memref<1x256xf32, #tpu.memory_space<vmem>>, vector<1x256xf32>
    %4 = vector.broadcast %3 : vector<1x256xf32> to vector<8x256xf32>
    %5 = arith.addf %2, %4 : vector<8x256xf32>
    %cst_5 = arith.constant 0.000000e+00 : f32
    %6 = vector.broadcast %cst_5 : f32 to vector<8x256xf32>
    %7 = arith.maximumf %5, %6 : vector<8x256xf32>
    %8 = arith.truncf %7 : vector<8x256xf32> to vector<8x256xbf16>
    %c0_6 = arith.constant 0 : index
    %c0_7 = arith.constant 0 : index
    %9 = vector.load %arg4[%c0_6, %c0_7] : memref<256x32xbf16, #tpu.memory_space<vmem>>, vector<256x32xbf16>
    %cst_8 = arith.constant dense<0.000000e+00> : vector<8x32xf32>
    %10 = tpu.matmul %8, %9, %cst_8 {dimension_numbers = #tpu.dot_dimension_numbers<[1], [0], [0], [1], [0, 0, 1, 1], [], []>} : vector<8x256xbf16>, vector<256x32xbf16>, vector<8x32xf32> -> vector<8x32xf32>
    %c0_9 = arith.constant 0 : index
    %c0_10 = arith.constant 0 : index
    %11 = vector.load %arg5[%c0_9, %c0_10] : memref<1x32xf32, #tpu.memory_space<vmem>>, vector<1x32xf32>
    %12 = vector.broadcast %11 : vector<1x32xf32> to vector<8x32xf32>
    %13 = arith.addf %10, %12 : vector<8x32xf32>
    %c0_11 = arith.constant 0 : index
    %c0_12 = arith.constant 0 : index
    %14 = vector.load %arg1[%c0_11, %c0_12] : memref<8x32xbf16, #tpu.memory_space<vmem>>, vector<8x32xbf16>
    %15 = arith.extf %14 : vector<8x32xbf16> to vector<8x32xf32>
    %16 = arith.addf %13, %15 : vector<8x32xf32>
    %17 = arith.truncf %16 : vector<8x32xf32> to vector<8x32xbf16>
    %c0_13 = arith.constant 0 : index
    %c0_14 = arith.constant 0 : index
    %18 = vector.load %arg6[%c0_13, %c0_14] : memref<32x128xbf16, #tpu.memory_space<vmem>>, vector<32x128xbf16>
    %cst_15 = arith.constant dense<0.000000e+00> : vector<8x128xf32>
    %19 = tpu.matmul %17, %18, %cst_15 {dimension_numbers = #tpu.dot_dimension_numbers<[1], [0], [0], [1], [0, 0, 1, 1], [], []>} : vector<8x32xbf16>, vector<32x128xbf16>, vector<8x128xf32> -> vector<8x128xf32>
    %c0_16 = arith.constant 0 : index
    %c0_17 = arith.constant 0 : index
    %20 = vector.load %arg7[%c0_16, %c0_17] : memref<1x128xf32, #tpu.memory_space<vmem>>, vector<1x128xf32>
    %21 = vector.broadcast %20 : vector<1x128xf32> to vector<8x128xf32>
    %22 = arith.addf %19, %21 : vector<8x128xf32>
    %c0_18 = arith.constant 0 : index
    %c0_19 = arith.constant 0 : index
    %23 = vector.load %arg8[%c0_18, %c0_19] : memref<8x128xf32, #tpu.memory_space<vmem>>, vector<8x128xf32>
    tpu.vector_store %arg8[%c0_18, %c0_19], %22 {strides = array<i32>} : memref<8x128xf32, #tpu.memory_space<vmem>>, vector<8x128xf32>,
    return
  }
  func.func @transform_0(%arg0: i32) -> (i32, i32) {
    %c0_i32 = arith.constant 0 : i32
    %c0_i32_0 = arith.constant 0 : i32
    return %arg0, %c0_i32 : i32, i32
  }
  func.func @transform_1(%arg0: i32) -> (i32, i32) {
    %c0_i32 = arith.constant 0 : i32
    %c0_i32_0 = arith.constant 0 : i32
    %c0_i32_1 = arith.constant 0 : i32
    return %c0_i32, %c0_i32_0 : i32, i32
  }
  func.func @transform_2(%arg0: i32) -> (i32, i32) {
    %c0_i32 = arith.constant 0 : i32
    %c0_i32_0 = arith.constant 0 : i32
    %c0_i32_1 = arith.constant 0 : i32
    return %c0_i32, %c0_i32_0 : i32, i32
  }
  func.func @transform_3(%arg0: i32) -> (i32, i32) {
    %c0_i32 = arith.constant 0 : i32
    %c0_i32_0 = arith.constant 0 : i32
    %c0_i32_1 = arith.constant 0 : i32
    return %c0_i32, %c0_i32_0 : i32, i32
  }
  func.func @transform_4(%arg0: i32) -> (i32, i32) {
    %c0_i32 = arith.constant 0 : i32
    %c0_i32_0 = arith.constant 0 : i32
    %c0_i32_1 = arith.constant 0 : i32
    return %c0_i32, %c0_i32_0 : i32, i32
  }
  func.func @transform_5(%arg0: i32) -> (i32, i32) {
    %c0_i32 = arith.constant 0 : i32
    %c0_i32_0 = arith.constant 0 : i32
    %c0_i32_1 = arith.constant 0 : i32
    return %c0_i32, %c0_i32_0 : i32, i32
  }
  func.func @transform_6(%arg0: i32) -> (i32, i32) {
    %c0_i32 = arith.constant 0 : i32
    %c0_i32_0 = arith.constant 0 : i32
    %c0_i32_1 = arith.constant 0 : i32
    return %c0_i32, %c0_i32_0 : i32, i32
  }
  func.func @transform_7(%arg0: i32) -> (i32, i32) {
    %c0_i32 = arith.constant 0 : i32
    %c0_i32_0 = arith.constant 0 : i32
    return %arg0, %c0_i32 : i32, i32
  }
}

</mosaic_0001>

<llo_original>
// kernel: tpu_custom_call.1
$region0: #{tpu_custom_call.1}
  #allocation0 [shape = 'u32[]', space=smem, size = 0x4, offset = 0x4, fixed_abs, tag = 'smem constant byte address 0x4 - core index']
  #allocation1 [shape = 'u32[144,128]{1,0:T(1,128)}', space=vmem, size = 0x12000, scoped, tag = 'internal scratch']
  %s0 = inlined_call_operand.vmem [shape: bf16[8,32], index: 0, kind: input, shape index: {}]
  %s1 = inlined_call_operand.vmem [shape: bf16[32,256], index: 1, kind: input, shape index: {}]
  %s2 = inlined_call_operand.vmem [shape: f32[1,256], index: 2, kind: input, shape index: {}]
  %s3 = inlined_call_operand.vmem [shape: bf16[256,32], index: 3, kind: input, shape index: {}]
  %s4 = inlined_call_operand.vmem [shape: f32[1,32], index: 4, kind: input, shape index: {}]
  %s5 = inlined_call_operand.vmem [shape: bf16[32,128], index: 5, kind: input, shape index: {}]
  %s6 = inlined_call_operand.vmem [shape: f32[1,128], index: 6, kind: input, shape index: {}]
  %s7 = inlined_call_operand.hbm [shape: f32[8,128], index: 7, kind: output, shape index: {}]
  %s8 = sld [smem:[#allocation0]]
  $region38: #{tpu_custom_call.1} parent=0
    _
  %s10 = ssub.s32 1, %s8
  %s11 = scalar_select 0, %s10, %s8
  $region1: #{tpu_custom_call.1} parent=0
    #allocation2 [shape = 'u8[4096]{0}', space=vmem, size = 0x1000, scoped, tag = 'output window, operand 0, single buffered']
    #allocation3 [shape = 's32[1]{0}', space=sflag, size = 0x4, scoped, tag = 'scoped memory for tpu_custom_call.1']
    %12 = vsyncpa [#allocation3], 0
    // Predicated region
    $region2: #{tpu_custom_call.1} parent=1 // pred_check
      _
    $region3: #{tpu_custom_call.1} parent=1 // pred_check_branch
      %14 = sbr.rel (0) target = $region5
    $region4: #{tpu_custom_call.1} parent=1 // pred_region
      _
    $region5: #{tpu_custom_call.1} parent=1 // pred_fallthru
      _
    // Predicated region
    $region6: #{tpu_custom_call.1} parent=1 // pred_check
      _
    $region7: #{tpu_custom_call.1} parent=1 // pred_check_branch
      %16 = sbr.rel (0) target = $region9
    $region8: #{tpu_custom_call.1} parent=1 // pred_region
      _
    $region9: #{tpu_custom_call.1} parent=1 // pred_fallthru
      _
    // Predicated region
    $region10: #{tpu_custom_call.1} parent=1 // pred_check
      _
    $region11: #{tpu_custom_call.1} parent=1 // pred_check_branch
      %18 = sbr.rel (0) target = $region13
    $region12: #{tpu_custom_call.1} parent=1 // pred_region
      _
    $region13: #{tpu_custom_call.1} parent=1 // pred_fallthru
      _
    // Predicated region
    $region14: #{tpu_custom_call.1} parent=1 // pred_check
      _
    $region15: #{tpu_custom_call.1} parent=1 // pred_check_branch
      %20 = sbr.rel (0) target = $region17
    $region16: #{tpu_custom_call.1} parent=1 // pred_region
      _
    $region17: #{tpu_custom_call.1} parent=1 // pred_fallthru
      _
    // Predicated region
    $region18: #{tpu_custom_call.1} parent=1 // pred_check
      _
    $region19: #{tpu_custom_call.1} parent=1 // pred_check_branch
      %22 = sbr.rel (0) target = $region21
    $region20: #{tpu_custom_call.1} parent=1 // pred_region
      _
    $region21: #{tpu_custom_call.1} parent=1 // pred_fallthru
      _
    // Predicated region
    $region22: #{tpu_custom_call.1} parent=1 // pred_check
      _
    $region23: #{tpu_custom_call.1} parent=1 // pred_check_branch
      %24 = sbr.rel (0) target = $region25
    $region24: #{tpu_custom_call.1} parent=1 // pred_region
      _
    $region25: #{tpu_custom_call.1} parent=1 // pred_fallthru
      _
    // Predicated region
    $region26: #{tpu_custom_call.1} parent=1 // pred_check
      _
    $region27: #{tpu_custom_call.1} parent=1 // pred_check_branch
      %26 = sbr.rel (0) target = $region29
    $region28: #{tpu_custom_call.1} parent=1 // pred_region
      _
    $region29: #{tpu_custom_call.1} parent=1 // pred_fallthru
      _
    %v28 = vld [vmem:[%s0] sm:$0xf]
    %v29 = vld [vmem:[%s1] sm:$0xff]
    %v30 = vld [vmem:[%s1 + $0x8] sm:$0xff]
    %v31 = vld [vmem:[%s1 + $0x10] sm:$0xff]
    %v32 = vld [vmem:[%s1 + $0x18] sm:$0xff]
    %v33 = vld [vmem:[%s2] sm:$0x3]
    %v35 = vlaneseq
    %v36 = vshrl.u32 %v35, 7
    %v37 = vsub.s32 0, %v36
    %v38 = vrot.slane %v33, %v37
    %v39 = vlaneseq
    %v40 = vshrl.u32 %v39, 7
    %v41 = vsub.s32 1, %v40
    %v42 = vrot.slane %v33, %v41
    %v49 = vunpack.c.l.b16 %v29
    %v50 = vunpack.c.h.b16 %v29
    %v51 = vunpack.c.l.b16 %v30
    %v52 = vunpack.c.h.b16 %v30
    %v53 = vunpack.c.l.b16 %v31
    %v54 = vunpack.c.h.b16 %v31
    %v55 = vunpack.c.l.b16 %v32
    %v56 = vunpack.c.h.b16 %v32
    %v57 = vpack.c.b16 %v51, %v49
    %v58 = vpack.c.b16 %v52, %v50
    %v59 = vpack.c.b16 %v55, %v53
    %v60 = vpack.c.b16 %v56, %v54
    %vm65 = vcmask 261120
    %v67 = vsel %vm65, %v28, 0
    %69 = vmatprep.subr.bf16.mxu0 0
    %70 = vmatpush1.bf16.msra.mxu0 0
    %71 = vmatprep.subr.bf16.mxu0 0
    %72 = vmatpush1.bf16.msra.mxu0 0
    %73 = vmatprep.subr.bf16.mxu0 0
    %74 = vmatpush1.bf16.msra.mxu0 0
    %75 = vmatprep.subr.bf16.mxu0 0
    %76 = vmatpush1.bf16.msra.mxu0 0
    %77 = vmatprep.subr.bf16.mxu0 0
    %78 = vmatpush1.bf16.msra.mxu0 0
    %79 = vmatprep.subr.bf16.mxu0 0
    %80 = vmatpush1.bf16.msra.mxu0 0
    %81 = vmatprep.subr.bf16.mxu0 %v60
    %82 = vmatpush1.bf16.msra.mxu0 %v59
    %83 = vmatprep.subr.bf16.mxu0 %v58
    %84 = vmatpush1.bf16.msra.mxu0 %v57
    %85 = vmatprep.subr.bf16.mxu0 0
    %86 = vmatpush2.bf16.msra.mxu0 0
    %87 = vmatprep.subr.bf16.mxu0 0
    %88 = vmatpush2.bf16.msra.mxu0 0
    %89 = vmatprep.subr.bf16.mxu0 0
    %90 = vmatpush2.bf16.msra.mxu0 0
    %91 = vmatprep.subr.bf16.mxu0 0
    %92 = vmatpush2.bf16.msra.mxu0 0
    %93 = vmatprep.subr.bf16.mxu0 0
    %94 = vmatpush2.bf16.msra.mxu0 0
    %95 = vmatprep.subr.bf16.mxu0 0
    %96 = vmatpush2.bf16.msra.mxu0 0
    %97 = vmatprep.subr.bf16.mxu0 0
    %98 = vmatpush2.bf16.msra.mxu0 0
    %99 = vmatprep.subr.bf16.mxu0 0
    %100 = vmatpush2.bf16.msra.mxu0 0
    %101 = vmatprep.mubr.bf16.mxu0 0
    %102 = vmatmul.mubr.bf16.gmra.mxu0 %v67
    %v103 = vpop.f32.mrf.mxu0
    %v104 = vadd.f32 %v38, %v103
    %v105 = vpop.f32.mrf.mxu0
    %v106 = vadd.f32 %v42, %v105
    %v107 = vpop.f32.mrf.mxu0
    %v108 = vpop.f32.mrf.mxu0
    %109 = vdwg.mxu0
    %v110 = vmax.f32 %v104, 0.0
    %v111 = vmax.f32 %v106, 0.0
    %v112 = vpack.c.bf16 %v110, %v110
    %v113 = vpack.c.bf16 %v111, %v111
    %v114 = vld [vmem:[%s3] sm:$0xf]
    %v115 = vld [vmem:[%s3 + $0x4] sm:$0xf]
    %v116 = vld [vmem:[%s3 + $0x8] sm:$0xf]
    %v117 = vld [vmem:[%s3 + $0xc] sm:$0xf]
    %v118 = vld [vmem:[%s3 + $0x10] sm:$0xf]
    %v119 = vld [vmem:[%s3 + $0x14] sm:$0xf]
    %v120 = vld [vmem:[%s3 + $0x18] sm:$0xf]
    %v121 = vld [vmem:[%s3 + $0x1c] sm:$0xf]
    %v122 = vld [vmem:[%s3 + $0x20] sm:$0xf]
    %v123 = vld [vmem:[%s3 + $0x24] sm:$0xf]
    %v124 = vld [vmem:[%s3 + $0x28] sm:$0xf]
    %v125 = vld [vmem:[%s3 + $0x2c] sm:$0xf]
    %v126 = vld [vmem:[%s3 + $0x30] sm:$0xf]
    %v127 = vld [vmem:[%s3 + $0x34] sm:$0xf]
    %v128 = vld [vmem:[%s3 + $0x38] sm:$0xf]
    %v129 = vld [vmem:[%s3 + $0x3c] sm:$0xf]
    %v130 = vld [vmem:[%s3 + $0x40] sm:$0xf]
    %v131 = vld [vmem:[%s3 + $0x44] sm:$0xf]
    %v132 = vld [vmem:[%s3 + $0x48] sm:$0xf]
    %v133 = vld [vmem:[%s3 + $0x4c] sm:$0xf]
    %v134 = vld [vmem:[%s3 + $0x50] sm:$0xf]
    %v135 = vld [vmem:[%s3 + $0x54] sm:$0xf]
    %v136 = vld [vmem:[%s3 + $0x58] sm:$0xf]
    %v137 = vld [vmem:[%s3 + $0x5c] sm:$0xf]
    %v138 = vld [vmem:[%s3 + $0x60] sm:$0xf]
    %v139 = vld [vmem:[%s3 + $0x64] sm:$0xf]
    %v140 = vld [vmem:[%s3 + $0x68] sm:$0xf]
    %v141 = vld [vmem:[%s3 + $0x6c] sm:$0xf]
    %v142 = vld [vmem:[%s3 + $0x70] sm:$0xf]
    %v143 = vld [vmem:[%s3 + $0x74] sm:$0xf]
    %v144 = vld [vmem:[%s3 + $0x78] sm:$0xf]
    %v145 = vld [vmem:[%s3 + $0x7c] sm:$0xf]
    %v146 = vld [vmem:[%s4] sm:$0x1]
    %v148 = vlaneseq
    %v149 = vshrl.u32 %v148, 7
    %v150 = vsub.s32 0, %v149
    %v151 = vrot.slane %v146, %v150
    %v185 = vunpack.c.l.b16 %v114
    %v186 = vunpack.c.l.b16 %v115
    %v187 = vunpack.c.l.b16 %v116
    %v188 = vunpack.c.l.b16 %v117
    %v189 = vunpack.c.l.b16 %v118
    %v190 = vunpack.c.l.b16 %v119
    %v191 = vunpack.c.l.b16 %v120
    %v192 = vunpack.c.l.b16 %v121
    %v193 = vunpack.c.l.b16 %v122
    %v194 = vunpack.c.l.b16 %v123
    %v195 = vunpack.c.l.b16 %v124
    %v196 = vunpack.c.l.b16 %v125
    %v197 = vunpack.c.l.b16 %v126
    %v198 = vunpack.c.l.b16 %v127
    %v199 = vunpack.c.l.b16 %v128
    %v200 = vunpack.c.l.b16 %v129
    %v201 = vunpack.c.l.b16 %v130
    %v202 = vunpack.c.l.b16 %v131
    %v203 = vunpack.c.l.b16 %v132
    %v204 = vunpack.c.l.b16 %v133
    %v205 = vunpack.c.l.b16 %v134
    %v206 = vunpack.c.l.b16 %v135
    %v207 = vunpack.c.l.b16 %v136
    %v208 = vunpack.c.l.b16 %v137
    %v209 = vunpack.c.l.b16 %v138
    %v210 = vunpack.c.l.b16 %v139
    %v211 = vunpack.c.l.b16 %v140
    %v212 = vunpack.c.l.b16 %v141
    %v213 = vunpack.c.l.b16 %v142
    %v214 = vunpack.c.l.b16 %v143
    %v215 = vunpack.c.l.b16 %v144
    %v216 = vunpack.c.l.b16 %v145
    %v217 = vpack.c.b16 %v186, %v185
    %v218 = vpack.c.b16 %v188, %v187
    %v219 = vpack.c.b16 %v190, %v189
    %v220 = vpack.c.b16 %v192, %v191
    %v221 = vpack.c.b16 %v194, %v193
    %v222 = vpack.c.b16 %v196, %v195
    %v223 = vpack.c.b16 %v198, %v197
    %v224 = vpack.c.b16 %v200, %v199
    %v225 = vpack.c.b16 %v202, %v201
    %v226 = vpack.c.b16 %v204, %v203
    %v227 = vpack.c.b16 %v206, %v205
    %v228 = vpack.c.b16 %v208, %v207
    %v229 = vpack.c.b16 %v210, %v209
    %v230 = vpack.c.b16 %v212, %v211
    %v231 = vpack.c.b16 %v214, %v213
    %v232 = vpack.c.b16 %v216, %v215
    %249 = vmatprep.subr.bf16.mxu0 0
    %250 = vmatpush1.bf16.msra.mxu0 %v224
    %251 = vmatprep.subr.bf16.mxu0 0
    %252 = vmatpush1.bf16.msra.mxu0 %v223
    %253 = vmatprep.subr.bf16.mxu0 0
    %254 = vmatpush1.bf16.msra.mxu0 %v222
    %255 = vmatprep.subr.bf16.mxu0 0
    %256 = vmatpush1.bf16.msra.mxu0 %v221
    %257 = vmatprep.subr.bf16.mxu0 0
    %258 = vmatpush1.bf16.msra.mxu0 %v220
    %259 = vmatprep.subr.bf16.mxu0 0
    %260 = vmatpush1.bf16.msra.mxu0 %v219
    %261 = vmatprep.subr.bf16.mxu0 0
    %262 = vmatpush1.bf16.msra.mxu0 %v218
    %263 = vmatprep.subr.bf16.mxu0 0
    %264 = vmatpush1.bf16.msra.mxu0 %v217
    %265 = vmatprep.subr.bf16.mxu0 0
    %266 = vmatpush2.bf16.msra.mxu0 %v232
    %267 = vmatprep.subr.bf16.mxu0 0
    %268 = vmatpush2.bf16.msra.mxu0 %v231
    %269 = vmatprep.subr.bf16.mxu0 0
    %270 = vmatpush2.bf16.msra.mxu0 %v230
    %271 = vmatprep.subr.bf16.mxu0 0
    %272 = vmatpush2.bf16.msra.mxu0 %v229
    %273 = vmatprep.subr.bf16.mxu0 0
    %274 = vmatpush2.bf16.msra.mxu0 %v228
    %275 = vmatprep.subr.bf16.mxu0 0
    %276 = vmatpush2.bf16.msra.mxu0 %v227
    %277 = vmatprep.subr.bf16.mxu0 0
    %278 = vmatpush2.bf16.msra.mxu0 %v226
    %279 = vmatprep.subr.bf16.mxu0 0
    %280 = vmatpush2.bf16.msra.mxu0 %v225
    %281 = vmatprep.mubr.bf16.mxu0 %v113
    %282 = vmatmul.mubr.bf16.gmra.mxu0 %v112
    %v283 = vpop.f32.mrf.mxu0
    %v284 = vadd.f32 %v151, %v283
    %v285 = vpop.f32.mrf.mxu0
    %v286 = vpop.f32.mrf.mxu0
    %v287 = vpop.f32.mrf.mxu0
    %288 = vdwg.mxu0
    %v289 = vunpack.c.l.bf16 %v28
    %v290 = vadd.f32 %v284, %v289
    %v291 = vpack.c.bf16 %v290, %v290
    %v292 = vld [vmem:[%s5] sm:$0xf]
    %v293 = vld [vmem:[%s5 + $0x4] sm:$0xf]
    %v294 = vld [vmem:[%s5 + $0x8] sm:$0xf]
    %v295 = vld [vmem:[%s5 + $0xc] sm:$0xf]
    %v296 = vld [vmem:[%s6] sm:$0x1]
    %v298 = vlaneseq
    %v299 = vshrl.u32 %v298, 7
    %v300 = vsub.s32 0, %v299
    %v301 = vrot.slane %v296, %v300
    %v307 = vunpack.c.l.b16 %v292
    %v308 = vunpack.c.l.b16 %v293
    %v309 = vunpack.c.l.b16 %v294
    %v310 = vunpack.c.l.b16 %v295
    %v311 = vpack.c.b16 %v308, %v307
    %v312 = vpack.c.b16 %v310, %v309
    %v316 = vsel %vm65, %v291, 0
    %318 = vmatprep.subr.bf16.mxu0 0
    %319 = vmatpush1.bf16.msra.mxu0 0
    %320 = vmatprep.subr.bf16.mxu0 0
    %321 = vmatpush1.bf16.msra.mxu0 0
    %322 = vmatprep.subr.bf16.mxu0 0
    %323 = vmatpush1.bf16.msra.mxu0 0
    %324 = vmatprep.subr.bf16.mxu0 0
    %325 = vmatpush1.bf16.msra.mxu0 0
    %326 = vmatprep.subr.bf16.mxu0 0
    %327 = vmatpush1.bf16.msra.mxu0 0
    %328 = vmatprep.subr.bf16.mxu0 0
    %329 = vmatpush1.bf16.msra.mxu0 0
    %330 = vmatprep.subr.bf16.mxu0 0
    %331 = vmatpush1.bf16.msra.mxu0 %v312
    %332 = vmatprep.subr.bf16.mxu0 0
    %333 = vmatpush1.bf16.msra.mxu0 %v311
    %334 = vmatprep.subr.bf16.mxu0 0
    %335 = vmatpush2.bf16.msra.mxu0 0
    %336 = vmatprep.subr.bf16.mxu0 0
    %337 = vmatpush2.bf16.msra.mxu0 0
    %338 = vmatprep.subr.bf16.mxu0 0
    %339 = vmatpush2.bf16.msra.mxu0 0
    %340 = vmatprep.subr.bf16.mxu0 0
    %341 = vmatpush2.bf16.msra.mxu0 0
    %342 = vmatprep.subr.bf16.mxu0 0
    %343 = vmatpush2.bf16.msra.mxu0 0
    %344 = vmatprep.subr.bf16.mxu0 0
    %345 = vmatpush2.bf16.msra.mxu0 0
    %346 = vmatprep.subr.bf16.mxu0 0
    %347 = vmatpush2.bf16.msra.mxu0 0
    %348 = vmatprep.subr.bf16.mxu0 0
    %349 = vmatpush2.bf16.msra.mxu0 0
    %350 = vmatprep.mubr.bf16.mxu0 0
    %351 = vmatmul.mubr.bf16.gmra.mxu0 %v316
    %v352 = vpop.f32.mrf.mxu0
    %v353 = vadd.f32 %v301, %v352
    %v354 = vpop.f32.mrf.mxu0
    %v355 = vpop.f32.mrf.mxu0
    %v356 = vpop.f32.mrf.mxu0
    %357 = vdwg.mxu0
    %358 = vst [vmem:[#allocation2] sm:$0xff] %v353
    // Predicated region
    $region30: #{tpu_custom_call.1} parent=1 // pred_check
      _
    $region31: #{tpu_custom_call.1} parent=1 // pred_check_branch
      %360 = sbr.rel (0) target = $region33
    $region32: #{tpu_custom_call.1} parent=1 // pred_region
      %s362 = ssub.s32 128, 128
      %363 = vsyncadd [#allocation3], %s362
      %s365 = sshll.u32 [#allocation2], 4
      %s366 = int_to_ptr.vmem [resolvable:$true] %s365
      %368 = dma.vmem_to_hbm [thread:$0]  %s366, 128, %s7, [#allocation3]
    $region33: #{tpu_custom_call.1} parent=1 // pred_fallthru
      _
    // Predicated region
    $region34: #{tpu_custom_call.1} parent=1 // pred_check
      _
    $region35: #{tpu_custom_call.1} parent=1 // pred_check_branch
      %370 = sbr.rel (0) target = $region37
    $region36: #{tpu_custom_call.1} parent=1 // pred_region
      %371 = dma.done [#allocation3], 128
    $region37: #{tpu_custom_call.1} parent=1 // pred_fallthru
      _
    %372 = vsyncpa [#allocation3], 1

// kernel: tpu_custom_call.1
$region0: #{tpu_custom_call.1}
  #allocation0 [shape = 'u32[]', space=smem, size = 0x4, offset = 0x4, fixed_abs, tag = 'smem constant byte address 0x4 - core index']
  #allocation1 [shape = 'u32[144,128]{1,0:T(1,128)}', space=vmem, size = 0x12000, scoped, tag = 'internal scratch']
  %s0 = inlined_call_operand.vmem [shape: bf16[8,32], index: 0, kind: input, shape index: {}]
  %s1 = inlined_call_operand.vmem [shape: bf16[32,256], index: 1, kind: input, shape index: {}]
  %s2 = inlined_call_operand.vmem [shape: f32[1,256], index: 2, kind: input, shape index: {}]
  %s3 = inlined_call_operand.vmem [shape: bf16[256,32], index: 3, kind: input, shape index: {}]
  %s4 = inlined_call_operand.vmem [shape: f32[1,32], index: 4, kind: input, shape index: {}]
  %s5 = inlined_call_operand.vmem [shape: bf16[32,128], index: 5, kind: input, shape index: {}]
  %s6 = inlined_call_operand.vmem [shape: f32[1,128], index: 6, kind: input, shape index: {}]
  %s7 = inlined_call_operand.hbm [shape: f32[8,128], index: 7, kind: output, shape index: {}]
  %s8 = sld [smem:[#allocation0]]
  $region38: #{tpu_custom_call.1} parent=0
    _
  %s10 = ssub.s32 1, %s8
  %s11 = scalar_select 0, %s10, %s8
  $region1: #{tpu_custom_call.1} parent=0
    #allocation2 [shape = 'u8[4096]{0}', space=vmem, size = 0x1000, scoped, tag = 'output window, operand 0, single buffered']
    #allocation3 [shape = 's32[1]{0}', space=sflag, size = 0x4, scoped, tag = 'scoped memory for tpu_custom_call.1']
    %12 = vsyncpa [#allocation3], 0
    // Predicated region
    $region2: #{tpu_custom_call.1} parent=1 // pred_check
      _
    $region3: #{tpu_custom_call.1} parent=1 // pred_check_branch
      %14 = sbr.rel (0) target = $region5
    $region4: #{tpu_custom_call.1} parent=1 // pred_region
      _
    $region5: #{tpu_custom_call.1} parent=1 // pred_fallthru
      _
    // Predicated region
    $region6: #{tpu_custom_call.1} parent=1 // pred_check
      _
    $region7: #{tpu_custom_call.1} parent=1 // pred_check_branch
      %16 = sbr.rel (0) target = $region9
    $region8: #{tpu_custom_call.1} parent=1 // pred_region
      _
    $region9: #{tpu_custom_call.1} parent=1 // pred_fallthru
      _
    // Predicated region
    $region10: #{tpu_custom_call.1} parent=1 // pred_check
      _
    $region11: #{tpu_custom_call.1} parent=1 // pred_check_branch
      %18 = sbr.rel (0) target = $region13
    $region12: #{tpu_custom_call.1} parent=1 // pred_region
      _
    $region13: #{tpu_custom_call.1} parent=1 // pred_fallthru
      _
    // Predicated region
    $region14: #{tpu_custom_call.1} parent=1 // pred_check
      _
    $region15: #{tpu_custom_call.1} parent=1 // pred_check_branch
      %20 = sbr.rel (0) target = $region17
    $region16: #{tpu_custom_call.1} parent=1 // pred_region
      _
    $region17: #{tpu_custom_call.1} parent=1 // pred_fallthru
      _
    // Predicated region
    $region18: #{tpu_custom_call.1} parent=1 // pred_check
      _
    $region19: #{tpu_custom_call.1} parent=1 // pred_check_branch
      %22 = sbr.rel (0) target = $region21
    $region20: #{tpu_custom_call.1} parent=1 // pred_region
      _
    $region21: #{tpu_custom_call.1} parent=1 // pred_fallthru
      _
    // Predicated region
    $region22: #{tpu_custom_call.1} parent=1 // pred_check
      _
    $region23: #{tpu_custom_call.1} parent=1 // pred_check_branch
      %24 = sbr.rel (0) target = $region25
    $region24: #{tpu_custom_call.1} parent=1 // pred_region
      _
    $region25: #{tpu_custom_call.1} parent=1 // pred_fallthru
      _
    // Predicated region
    $region26: #{tpu_custom_call.1} parent=1 // pred_check
      _
    $region27: #{tpu_custom_call.1} parent=1 // pred_check_branch
      %26 = sbr.rel (0) target = $region29
    $region28: #{tpu_custom_call.1} parent=1 // pred_region
      _
    $region29: #{tpu_custom_call.1} parent=1 // pred_fallthru
      _
    %v28 = vld [vmem:[%s0] sm:$0xf]
    %v29 = vld [vmem:[%s1] sm:$0xff]
    %v30 = vld [vmem:[%s1 + $0x8] sm:$0xff]
    %v31 = vld [vmem:[%s1 + $0x10] sm:$0xff]
    %v32 = vld [vmem:[%s1 + $0x18] sm:$0xff]
    %v33 = vld [vmem:[%s2] sm:$0x3]
    %v35 = vlaneseq
    %v36 = vshrl.u32 %v35, 7
    %v37 = vsub.s32 0, %v36
    %v38 = vrot.slane %v33, %v37
    %v39 = vlaneseq
    %v40 = vshrl.u32 %v39, 7
    %v41 = vsub.s32 1, %v40
    %v42 = vrot.slane %v33, %v41
    %v49 = vunpack.c.l.b16 %v29
    %v50 = vunpack.c.h.b16 %v29
    %v51 = vunpack.c.l.b16 %v30
    %v52 = vunpack.c.h.b16 %v30
    %v53 = vunpack.c.l.b16 %v31
    %v54 = vunpack.c.h.b16 %v31
    %v55 = vunpack.c.l.b16 %v32
    %v56 = vunpack.c.h.b16 %v32
    %v57 = vpack.c.b16 %v51, %v49
    %v58 = vpack.c.b16 %v52, %v50
    %v59 = vpack.c.b16 %v55, %v53
    %v60 = vpack.c.b16 %v56, %v54
    %vm65 = vcmask 261120
    %v67 = vsel %vm65, %v28, 0
    %69 = vmatprep.subr.bf16.mxu0 0
    %70 = vmatpush1.bf16.msra.mxu0 0
    %71 = vmatprep.subr.bf16.mxu0 0
    %72 = vmatpush1.bf16.msra.mxu0 0
    %73 = vmatprep.subr.bf16.mxu0 0
    %74 = vmatpush1.bf16.msra.mxu0 0
    %75 = vmatprep.subr.bf16.mxu0 0
    %76 = vmatpush1.bf16.msra.mxu0 0
    %77 = vmatprep.subr.bf16.mxu0 0
    %78 = vmatpush1.bf16.msra.mxu0 0
    %79 = vmatprep.subr.bf16.mxu0 0
    %80 = vmatpush1.bf16.msra.mxu0 0
    %81 = vmatprep.subr.bf16.mxu0 %v60
    %82 = vmatpush1.bf16.msra.mxu0 %v59
    %83 = vmatprep.subr.bf16.mxu0 %v58
    %84 = vmatpush1.bf16.msra.mxu0 %v57
    %85 = vmatprep.subr.bf16.mxu0 0
    %86 = vmatpush2.bf16.msra.mxu0 0
    %87 = vmatprep.subr.bf16.mxu0 0
    %88 = vmatpush2.bf16.msra.mxu0 0
    %89 = vmatprep.subr.bf16.mxu0 0
    %90 = vmatpush2.bf16.msra.mxu0 0
    %91 = vmatprep.subr.bf16.mxu0 0
    %92 = vmatpush2.bf16.msra.mxu0 0
    %93 = vmatprep.subr.bf16.mxu0 0
    %94 = vmatpush2.bf16.msra.mxu0 0
    %95 = vmatprep.subr.bf16.mxu0 0
    %96 = vmatpush2.bf16.msra.mxu0 0
    %97 = vmatprep.subr.bf16.mxu0 0
    %98 = vmatpush2.bf16.msra.mxu0 0
    %99 = vmatprep.subr.bf16.mxu0 0
    %100 = vmatpush2.bf16.msra.mxu0 0
    %101 = vmatprep.mubr.bf16.mxu0 0
    %102 = vmatmul.mubr.bf16.gmra.mxu0 %v67
    %v103 = vpop.f32.mrf.mxu0
    %v104 = vadd.f32 %v38, %v103
    %v105 = vpop.f32.mrf.mxu0
    %v106 = vadd.f32 %v42, %v105
    %v107 = vpop.f32.mrf.mxu0
    %v108 = vpop.f32.mrf.mxu0
    %109 = vdwg.mxu0
    %v110 = vmax.f32 %v104, 0.0
    %v111 = vmax.f32 %v106, 0.0
    %v112 = vpack.c.bf16 %v110, %v110
    %v113 = vpack.c.bf16 %v111, %v111
    %v114 = vld [vmem:[%s3] sm:$0xf]
    %v115 = vld [vmem:[%s3 + $0x4] sm:$0xf]
    %v116 = vld [vmem:[%s3 + $0x8] sm:$0xf]
    %v117 = vld [vmem:[%s3 + $0xc] sm:$0xf]
    %v118 = vld [vmem:[%s3 + $0x10] sm:$0xf]
    %v119 = vld [vmem:[%s3 + $0x14] sm:$0xf]
    %v120 = vld [vmem:[%s3 + $0x18] sm:$0xf]
    %v121 = vld [vmem:[%s3 + $0x1c] sm:$0xf]
    %v122 = vld [vmem:[%s3 + $0x20] sm:$0xf]
    %v123 = vld [vmem:[%s3 + $0x24] sm:$0xf]
    %v124 = vld [vmem:[%s3 + $0x28] sm:$0xf]
    %v125 = vld [vmem:[%s3 + $0x2c] sm:$0xf]
    %v126 = vld [vmem:[%s3 + $0x30] sm:$0xf]
    %v127 = vld [vmem:[%s3 + $0x34] sm:$0xf]
    %v128 = vld [vmem:[%s3 + $0x38] sm:$0xf]
    %v129 = vld [vmem:[%s3 + $0x3c] sm:$0xf]
    %v130 = vld [vmem:[%s3 + $0x40] sm:$0xf]
    %v131 = vld [vmem:[%s3 + $0x44] sm:$0xf]
    %v132 = vld [vmem:[%s3 + $0x48] sm:$0xf]
    %v133 = vld [vmem:[%s3 + $0x4c] sm:$0xf]
    %v134 = vld [vmem:[%s3 + $0x50] sm:$0xf]
    %v135 = vld [vmem:[%s3 + $0x54] sm:$0xf]
    %v136 = vld [vmem:[%s3 + $0x58] sm:$0xf]
    %v137 = vld [vmem:[%s3 + $0x5c] sm:$0xf]
    %v138 = vld [vmem:[%s3 + $0x60] sm:$0xf]
    %v139 = vld [vmem:[%s3 + $0x64] sm:$0xf]
    %v140 = vld [vmem:[%s3 + $0x68] sm:$0xf]
    %v141 = vld [vmem:[%s3 + $0x6c] sm:$0xf]
    %v142 = vld [vmem:[%s3 + $0x70] sm:$0xf]
    %v143 = vld [vmem:[%s3 + $0x74] sm:$0xf]
    %v144 = vld [vmem:[%s3 + $0x78] sm:$0xf]
    %v145 = vld [vmem:[%s3 + $0x7c] sm:$0xf]
    %v146 = vld [vmem:[%s4] sm:$0x1]
    %v148 = vlaneseq
    %v149 = vshrl.u32 %v148, 7
    %v150 = vsub.s32 0, %v149
    %v151 = vrot.slane %v146, %v150
    %v185 = vunpack.c.l.b16 %v114
    %v186 = vunpack.c.l.b16 %v115
    %v187 = vunpack.c.l.b16 %v116
    %v188 = vunpack.c.l.b16 %v117
    %v189 = vunpack.c.l.b16 %v118
    %v190 = vunpack.c.l.b16 %v119
    %v191 = vunpack.c.l.b16 %v120
    %v192 = vunpack.c.l.b16 %v121
    %v193 = vunpack.c.l.b16 %v122
    %v194 = vunpack.c.l.b16 %v123
    %v195 = vunpack.c.l.b16 %v124
    %v196 = vunpack.c.l.b16 %v125
    %v197 = vunpack.c.l.b16 %v126
    %v198 = vunpack.c.l.b16 %v127
    %v199 = vunpack.c.l.b16 %v128
    %v200 = vunpack.c.l.b16 %v129
    %v201 = vunpack.c.l.b16 %v130
    %v202 = vunpack.c.l.b16 %v131
    %v203 = vunpack.c.l.b16 %v132
    %v204 = vunpack.c.l.b16 %v133
    %v205 = vunpack.c.l.b16 %v134
    %v206 = vunpack.c.l.b16 %v135
    %v207 = vunpack.c.l.b16 %v136
    %v208 = vunpack.c.l.b16 %v137
    %v209 = vunpack.c.l.b16 %v138
    %v210 = vunpack.c.l.b16 %v139
    %v211 = vunpack.c.l.b16 %v140
    %v212 = vunpack.c.l.b16 %v141
    %v213 = vunpack.c.l.b16 %v142
    %v214 = vunpack.c.l.b16 %v143
    %v215 = vunpack.c.l.b16 %v144
    %v216 = vunpack.c.l.b16 %v145
    %v217 = vpack.c.b16 %v186, %v185
    %v218 = vpack.c.b16 %v188, %v187
    %v219 = vpack.c.b16 %v190, %v189
    %v220 = vpack.c.b16 %v192, %v191
    %v221 = vpack.c.b16 %v194, %v193
    %v222 = vpack.c.b16 %v196, %v195
    %v223 = vpack.c.b16 %v198, %v197
    %v224 = vpack.c.b16 %v200, %v199
    %v225 = vpack.c.b16 %v202, %v201
    %v226 = vpack.c.b16 %v204, %v203
    %v227 = vpack.c.b16 %v206, %v205
    %v228 = vpack.c.b16 %v208, %v207
    %v229 = vpack.c.b16 %v210, %v209
    %v230 = vpack.c.b16 %v212, %v211
    %v231 = vpack.c.b16 %v214, %v213
    %v232 = vpack.c.b16 %v216, %v215
    %249 = vmatprep.subr.bf16.mxu0 0
    %250 = vmatpush1.bf16.msra.mxu0 %v224
    %251 = vmatprep.subr.bf16.mxu0 0
    %252 = vmatpush1.bf16.msra.mxu0 %v223
    %253 = vmatprep.subr.bf16.mxu0 0
    %254 = vmatpush1.bf16.msra.mxu0 %v222
    %255 = vmatprep.subr.bf16.mxu0 0
    %256 = vmatpush1.bf16.msra.mxu0 %v221
    %257 = vmatprep.subr.bf16.mxu0 0
    %258 = vmatpush1.bf16.msra.mxu0 %v220
    %259 = vmatprep.subr.bf16.mxu0 0
    %260 = vmatpush1.bf16.msra.mxu0 %v219
    %261 = vmatprep.subr.bf16.mxu0 0
    %262 = vmatpush1.bf16.msra.mxu0 %v218
    %263 = vmatprep.subr.bf16.mxu0 0
    %264 = vmatpush1.bf16.msra.mxu0 %v217
    %265 = vmatprep.subr.bf16.mxu0 0
    %266 = vmatpush2.bf16.msra.mxu0 %v232
    %267 = vmatprep.subr.bf16.mxu0 0
    %268 = vmatpush2.bf16.msra.mxu0 %v231
    %269 = vmatprep.subr.bf16.mxu0 0
    %270 = vmatpush2.bf16.msra.mxu0 %v230
    %271 = vmatprep.subr.bf16.mxu0 0
    %272 = vmatpush2.bf16.msra.mxu0 %v229
    %273 = vmatprep.subr.bf16.mxu0 0
    %274 = vmatpush2.bf16.msra.mxu0 %v228
    %275 = vmatprep.subr.bf16.mxu0 0
    %276 = vmatpush2.bf16.msra.mxu0 %v227
    %277 = vmatprep.subr.bf16.mxu0 0
    %278 = vmatpush2.bf16.msra.mxu0 %v226
    %279 = vmatprep.subr.bf16.mxu0 0
    %280 = vmatpush2.bf16.msra.mxu0 %v225
    %281 = vmatprep.mubr.bf16.mxu0 %v113
    %282 = vmatmul.mubr.bf16.gmra.mxu0 %v112
    %v283 = vpop.f32.mrf.mxu0
    %v284 = vadd.f32 %v151, %v283
    %v285 = vpop.f32.mrf.mxu0
    %v286 = vpop.f32.mrf.mxu0
    %v287 = vpop.f32.mrf.mxu0
    %288 = vdwg.mxu0
    %v289 = vunpack.c.l.bf16 %v28
    %v290 = vadd.f32 %v284, %v289
    %v291 = vpack.c.bf16 %v290, %v290
    %v292 = vld [vmem:[%s5] sm:$0xf]
    %v293 = vld [vmem:[%s5 + $0x4] sm:$0xf]
    %v294 = vld [vmem:[%s5 + $0x8] sm:$0xf]
    %v295 = vld [vmem:[%s5 + $0xc] sm:$0xf]
    %v296 = vld [vmem:[%s6] sm:$0x1]
    %v298 = vlaneseq
    %v299 = vshrl.u32 %v298, 7
    %v300 = vsub.s32 0, %v299
    %v301 = vrot.slane %v296, %v300
    %v307 = vunpack.c.l.b16 %v292
    %v308 = vunpack.c.l.b16 %v293
    %v309 = vunpack.c.l.b16 %v294
    %v310 = vunpack.c.l.b16 %v295
    %v311 = vpack.c.b16 %v308, %v307
    %v312 = vpack.c.b16 %v310, %v309
    %v316 = vsel %vm65, %v291, 0
    %318 = vmatprep.subr.bf16.mxu0 0
    %319 = vmatpush1.bf16.msra.mxu0 0
    %320 = vmatprep.subr.bf16.mxu0 0
    %321 = vmatpush1.bf16.msra.mxu0 0
    %322 = vmatprep.subr.bf16.mxu0 0
    %323 = vmatpush1.bf16.msra.mxu0 0
    %324 = vmatprep.subr.bf16.mxu0 0
    %325 = vmatpush1.bf16.msra.mxu0 0
    %326 = vmatprep.subr.bf16.mxu0 0
    %327 = vmatpush1.bf16.msra.mxu0 0
    %328 = vmatprep.subr.bf16.mxu0 0
    %329 = vmatpush1.bf16.msra.mxu0 0
    %330 = vmatprep.subr.bf16.mxu0 0
    %331 = vmatpush1.bf16.msra.mxu0 %v312
    %332 = vmatprep.subr.bf16.mxu0 0
    %333 = vmatpush1.bf16.msra.mxu0 %v311
    %334 = vmatprep.subr.bf16.mxu0 0
    %335 = vmatpush2.bf16.msra.mxu0 0
    %336 = vmatprep.subr.bf16.mxu0 0
    %337 = vmatpush2.bf16.msra.mxu0 0
    %338 = vmatprep.subr.bf16.mxu0 0
    %339 = vmatpush2.bf16.msra.mxu0 0
    %340 = vmatprep.subr.bf16.mxu0 0
    %341 = vmatpush2.bf16.msra.mxu0 0
    %342 = vmatprep.subr.bf16.mxu0 0
    %343 = vmatpush2.bf16.msra.mxu0 0
    %344 = vmatprep.subr.bf16.mxu0 0
    %345 = vmatpush2.bf16.msra.mxu0 0
    %346 = vmatprep.subr.bf16.mxu0 0
    %347 = vmatpush2.bf16.msra.mxu0 0
    %348 = vmatprep.subr.bf16.mxu0 0
    %349 = vmatpush2.bf16.msra.mxu0 0
    %350 = vmatprep.mubr.bf16.mxu0 0
    %351 = vmatmul.mubr.bf16.gmra.mxu0 %v316
    %v352 = vpop.f32.mrf.mxu0
    %v353 = vadd.f32 %v301, %v352
    %v354 = vpop.f32.mrf.mxu0
    %v355 = vpop.f32.mrf.mxu0
    %v356 = vpop.f32.mrf.mxu0
    %357 = vdwg.mxu0
    %358 = vst [vmem:[#allocation2] sm:$0xff] %v353
    // Predicated region
    $region30: #{tpu_custom_call.1} parent=1 // pred_check
      _
    $region31: #{tpu_custom_call.1} parent=1 // pred_check_branch
      %360 = sbr.rel (0) target = $region33
    $region32: #{tpu_custom_call.1} parent=1 // pred_region
      %s362 = ssub.s32 128, 128
      %363 = vsyncadd [#allocation3], %s362
      %s365 = sshll.u32 [#allocation2], 4
      %s366 = int_to_ptr.vmem [resolvable:$true] %s365
      %368 = dma.vmem_to_hbm [thread:$0]  %s366, 128, %s7, [#allocation3]
    $region33: #{tpu_custom_call.1} parent=1 // pred_fallthru
      _
    // Predicated region
    $region34: #{tpu_custom_call.1} parent=1 // pred_check
      _
    $region35: #{tpu_custom_call.1} parent=1 // pred_check_branch
      %370 = sbr.rel (0) target = $region37
    $region36: #{tpu_custom_call.1} parent=1 // pred_region
      %371 = dma.done [#allocation3], 128
    $region37: #{tpu_custom_call.1} parent=1 // pred_fallthru
      _
    %372 = vsyncpa [#allocation3], 1

</llo_original>
